<compile_context>
chip_gen: v6e
topology: v6e:2x2x1
jax: 0.10.0
libtpu: 0.0.40
codegen_flags: <defaults>
</compile_context>

<pallas_src>
import functools

import jax
import jax.numpy as jnp
from jax.experimental import pallas as pl
from jax.experimental.pallas import tpu as pltpu


def _round_up(n: int, m: int) -> int:
    return ((n + m - 1) // m) * m


def _make_kernel(n_actions: int):
    """Kernel closed over the number of real (unpadded) action lanes."""

    def kernel(x_ref, w1_ref, b1_ref, w2_ref, b2_ref, q_ref, act_ref):
        # Layer 1: cast x to bf16 in-register, MXU matmul with f32 accumulation,
        # bias + tanh in f32 (VPU/EUP) -> exact epilogue on every TPU generation.
        xb = x_ref[...].astype(w1_ref.dtype)
        h = jnp.dot(xb, w1_ref[...], preferred_element_type=jnp.float32)
        h = jnp.tanh(h + b1_ref[...])                       # (TB, H_PAD) f32

        # Layer 2: bf16 operands on the MXU, f32 accumulation + f32 bias.
        q = jnp.dot(h.astype(w2_ref.dtype), w2_ref[...],
                    preferred_element_type=jnp.float32)
        q = q + b2_ref[...]                                 # (TB, A_PAD) f32

        # Store only the real action lanes (tiny masked vst; ~32x less HBM writeback
        # than storing the padded 128-lane slab).
        q_ref[...] = q[:, :n_actions]

        # Greedy-action epilogue: first index of the row max over the real lanes
        # (padded lanes masked to -inf). One cheap XLU reduce per row.
        lane = jax.lax.broadcasted_iota(jnp.int32, q.shape, 1)
        qm = jnp.where(lane < n_actions, q, -jnp.inf)
        row_max = jnp.max(qm, axis=-1, keepdims=True)
        idx = jnp.min(jnp.where(qm == row_max, lane, jnp.int32(q.shape[-1])),
                      axis=-1, keepdims=True)
        act_ref[...] = idx.astype(jnp.int32)

    return kernel


def prepare_params(w1, b1, w2, b2):
    """One-time parameter prep (hoist out of the per-call path): pad hidden/action
    dims to the 128-lane width, cast matmul operands to bf16, keep biases in f32.
    Padding is numerically inert (tanh(0)=0, zero W2 rows/cols, zero padded biases)."""
    F, H = w1.shape
    A = w2.shape[1]
    H_PAD = _round_up(H, 128)   # 64 -> 128: lane-dense VPU/EUP work, full MXU K
    A_PAD = _round_up(A, 128)   # 4  -> 128: full MXU N inside the kernel
    w1p = jnp.zeros((F, H_PAD), jnp.bfloat16).at[:, :H].set(jnp.asarray(w1, jnp.bfloat16))
    b1p = jnp.zeros((1, H_PAD), jnp.float32).at[:, :H].set(
        jnp.asarray(b1, jnp.float32).reshape(1, H))
    w2p = jnp.zeros((H_PAD, A_PAD), jnp.bfloat16).at[:H, :A].set(jnp.asarray(w2, jnp.bfloat16))
    b2p = jnp.zeros((1, A_PAD), jnp.float32).at[:, :A].set(
        jnp.asarray(b2, jnp.float32).reshape(1, A))
    return w1p, b1p, w2p, b2p


@functools.partial(jax.jit, static_argnames=("n_actions", "tb"))
def network_forward(x, w1p, b1p, w2p, b2p, *, n_actions: int, tb: int = 1024):
    """Forward pass of Network.  Returns (q_values [B, n_actions] f32, action [B] i32)."""
    B, F = x.shape
    H_PAD = w1p.shape[1]
    A_PAD = w2p.shape[1]
    A = n_actions

    # x stays f32 straight from HBM; pad the batch only if it is not sublane-aligned.
    Bp = _round_up(B, 8)
    if Bp != B:
        x = jnp.pad(x, ((0, Bp - B), (0, 0)))

    # Batch tile: as large as possible (amortizes ~0.35us/grid step).  If the whole
    # batch would be a single tile but has >=32 rows, split it in two so the
    # "parallel" grid axis can use both TensorCores on v7x (negligible cost elsewhere).
    tb_eff = min(tb, Bp)
    if Bp >= 32 and pl.cdiv(Bp, tb_eff) < 2:
        tb_eff = _round_up(pl.cdiv(Bp, 2), 8)
    grid = (pl.cdiv(Bp, tb_eff),)

    cost = pl.CostEstimate(
        flops=2 * Bp * (F * H_PAD + H_PAD * A_PAD),
        transcendentals=Bp * H_PAD,
        bytes_accessed=(4 * Bp * F + 4 * Bp * A + 4 * Bp
                        + 2 * F * H_PAD + 4 * H_PAD + 2 * H_PAD * A_PAD + 4 * A_PAD),
    )

    q, act = pl.pallas_call(
        _make_kernel(A),
        out_shape=(
            jax.ShapeDtypeStruct((Bp, A), jnp.float32),   # real-width Q (no padded slab)
            jax.ShapeDtypeStruct((Bp, 1), jnp.int32),     # greedy action
        ),
        grid=grid,
        in_specs=[
            pl.BlockSpec((tb_eff, F), lambda i: (i, 0)),       # x (f32): tiled over batch
            pl.BlockSpec((F, H_PAD), lambda i: (0, 0)),        # W1: VMEM-resident
            pl.BlockSpec((1, H_PAD), lambda i: (0, 0)),        # b1: VMEM-resident
            pl.BlockSpec((H_PAD, A_PAD), lambda i: (0, 0)),    # W2: VMEM-resident
            pl.BlockSpec((1, A_PAD), lambda i: (0, 0)),        # b2: VMEM-resident
        ],
        out_specs=(
            pl.BlockSpec((tb_eff, A), lambda i: (i, 0)),       # q at real action width
            pl.BlockSpec((tb_eff, 1), lambda i: (i, 0)),       # greedy action
        ),
        compiler_params=pltpu.CompilerParams(
            dimension_semantics=("parallel",),                 # batch tiles across TCs (v7x)
        ),
        cost_estimate=cost,
    )(x, w1p, b1p, w2p, b2p)

    if Bp != B:          # static branch; no-op when the batch was already aligned
        q = q[:B]
        act = act[:B]
    return q, act[:, 0]


def init_params(key, in_features, hidden, action_num):
    # Mirrors nn.Linear init shapes (weights stored transposed as [in, out] for x @ W).
    k1, k2, k3, k4 = jax.random.split(key, 4)
    bound1 = 1.0 / jnp.sqrt(in_features)
    bound2 = 1.0 / jnp.sqrt(hidden)
    w1 = jax.random.uniform(k1, (in_features, hidden), jnp.float32, -bound1, bound1)
    b1 = jax.random.uniform(k2, (1, hidden), jnp.float32, -bound1, bound1)
    w2 = jax.random.uniform(k3, (hidden, action_num), jnp.float32, -bound2, bound2)
    b2 = jax.random.uniform(k4, (1, action_num), jnp.float32, -bound2, bound2)
    return w1, b1, w2, b2


if __name__ == "__main__":
    key = jax.random.PRNGKey(0)
    k_params, k_x = jax.random.split(key)

    # Small shapes consistent with the module: obs dim = 8, hidden = 64, actions = 4.
    batch = 8
    in_features = 8
    hidden = 64
    action_num = 4

    w1, b1, w2, b2 = init_params(k_params, in_features, hidden, action_num)
    # Parameter prep hoisted out of the per-call path (done once per weight update).
    w1p, b1p, w2p, b2p = prepare_params(w1, b1, w2, b2)
    x = jax.random.normal(k_x, (batch, in_features), dtype=jnp.float32)

    q, act = network_forward(x, w1p, b1p, w2p, b2p, n_actions=action_num)
    q = jax.block_until_ready(q)
    act = jax.block_until_ready(act)

    # Reference: pure-JAX f32 forward of the same module (loose tol for bf16 operands).
    q_ref = jnp.tanh(x @ w1 + b1) @ w2 + b2
    assert q.shape == (batch, action_num)
    assert act.shape == (batch,)
    assert jnp.allclose(q, q_ref, atol=3e-2, rtol=3e-2), "mismatch vs f32 reference"
    # In-kernel greedy action must match argmax of the kernel's own Q output.
    assert jnp.array_equal(act, jnp.argmax(q, axis=-1)), "act mismatch vs argmax(q)"

    print("KERNEL_OK")
</pallas_src>

<mosaic_0001>
module attributes {stable_mosaic.version = 11 : i64} {
  func.func @kernel(%arg0: i32, %arg1: memref<8x8xf32, #tpu.memory_space<vmem>>, %arg2: memref<8x128xbf16, #tpu.memory_space<vmem>>, %arg3: memref<1x128xf32, #tpu.memory_space<vmem>>, %arg4: memref<128x128xbf16, #tpu.memory_space<vmem>>, %arg5: memref<1x128xf32, #tpu.memory_space<vmem>>, %arg6: memref<8x4xf32, #tpu.memory_space<vmem>>, %arg7: memref<8x1xi32, #tpu.memory_space<vmem>>) attributes {dimension_semantics = [#tpu.dimension_semantics<parallel>], iteration_bounds = array<i64: 1>, scalar_prefetch = 0 : i64, scratch_operands = 0 : i64, tpu.core_type = #tpu.core_type<tc>, window_params = [{transform_indices = @transform_0, window_bounds = array<i64: 8, 8>}, {pipeline_mode = #tpu.pipeline_mode<synchronous>, transform_indices = @transform_1, window_bounds = array<i64: 8, 128>}, {pipeline_mode = #tpu.pipeline_mode<synchronous>, transform_indices = @transform_2, window_bounds = array<i64: 1, 128>}, {pipeline_mode = #tpu.pipeline_mode<synchronous>, transform_indices = @transform_3, window_bounds = array<i64: 128, 128>}, {pipeline_mode = #tpu.pipeline_mode<synchronous>, transform_indices = @transform_4, window_bounds = array<i64: 1, 128>}, {transform_indices = @transform_5, window_bounds = array<i64: 8, 4>}, {transform_indices = @transform_6, window_bounds = array<i64: 8, 1>}]} {
    %c0 = arith.constant 0 : index
    %c0_0 = arith.constant 0 : index
    %0 = vector.load %arg1[%c0, %c0_0] : memref<8x8xf32, #tpu.memory_space<vmem>>, vector<8x8xf32>
    %1 = arith.truncf %0 : vector<8x8xf32> to vector<8x8xbf16>
    %c0_1 = arith.constant 0 : index
    %c0_2 = arith.constant 0 : index
    %2 = vector.load %arg2[%c0_1, %c0_2] : memref<8x128xbf16, #tpu.memory_space<vmem>>, vector<8x128xbf16>
    %cst = arith.constant dense<0.000000e+00> : vector<8x128xf32>
    %3 = tpu.matmul %1, %2, %cst {dimension_numbers = #tpu.dot_dimension_numbers<[1], [0], [0], [1], [0, 0, 1, 1], [], []>} : vector<8x8xbf16>, vector<8x128xbf16>, vector<8x128xf32> -> vector<8x128xf32>
    %c0_3 = arith.constant 0 : index
    %c0_4 = arith.constant 0 : index
    %4 = vector.load %arg3[%c0_3, %c0_4] : memref<1x128xf32, #tpu.memory_space<vmem>>, vector<1x128xf32>
    %5 = vector.broadcast %4 : vector<1x128xf32> to vector<8x128xf32>
    %6 = arith.addf %3, %5 : vector<8x128xf32>
    %7 = math.tanh %6 : vector<8x128xf32>
    %8 = arith.truncf %7 : vector<8x128xf32> to vector<8x128xbf16>
    %c0_5 = arith.constant 0 : index
    %c0_6 = arith.constant 0 : index
    %9 = vector.load %arg4[%c0_5, %c0_6] : memref<128x128xbf16, #tpu.memory_space<vmem>>, vector<128x128xbf16>
    %cst_7 = arith.constant dense<0.000000e+00> : vector<8x128xf32>
    %10 = tpu.matmul %8, %9, %cst_7 {dimension_numbers = #tpu.dot_dimension_numbers<[1], [0], [0], [1], [0, 0, 1, 1], [], []>} : vector<8x128xbf16>, vector<128x128xbf16>, vector<8x128xf32> -> vector<8x128xf32>
    %c0_8 = arith.constant 0 : index
    %c0_9 = arith.constant 0 : index
    %11 = vector.load %arg5[%c0_8, %c0_9] : memref<1x128xf32, #tpu.memory_space<vmem>>, vector<1x128xf32>
    %12 = vector.broadcast %11 : vector<1x128xf32> to vector<8x128xf32>
    %13 = arith.addf %10, %12 : vector<8x128xf32>
    %14 = vector.extract_strided_slice %13 {offsets = [0, 0], sizes = [8, 4], strides = [1, 1]} : vector<8x128xf32> to vector<8x4xf32>
    %c0_10 = arith.constant 0 : index
    %c0_11 = arith.constant 0 : index
    %15 = vector.load %arg6[%c0_10, %c0_11] : memref<8x4xf32, #tpu.memory_space<vmem>>, vector<8x4xf32>
    tpu.vector_store %arg6[%c0_10, %c0_11], %14 {strides = array<i32>} : memref<8x4xf32, #tpu.memory_space<vmem>>, vector<8x4xf32>,
    %16 = tpu.iota {dimensions = array<i32: 1>} : vector<8x128xi32>
    %c4_i32 = arith.constant 4 : i32
    %17 = vector.broadcast %c4_i32 : i32 to vector<8x128xi32>
    %18 = arith.cmpi slt, %16, %17 : vector<8x128xi32>
    %cst_12 = arith.constant 0xFF800000 : f32
    %19 = vector.broadcast %cst_12 : f32 to vector<8x128xf32>
    %20 = arith.select %18, %13, %19 : vector<8x128xi1>, vector<8x128xf32>
    %cst_13 = arith.constant dense<0xFF800000> : vector<8xf32>
    %21 = vector.multi_reduction <maximumf>, %20, %cst_13 [1] : vector<8x128xf32> to vector<8xf32>
    %22 = vector.shape_cast %21 : vector<8xf32> to vector<8x1xf32>
    %23 = vector.broadcast %22 : vector<8x1xf32> to vector<8x128xf32>
    %24 = arith.cmpf oeq, %20, %23 : vector<8x128xf32>
    %c128_i32 = arith.constant 128 : i32
    %25 = vector.broadcast %c128_i32 : i32 to vector<8x128xi32>
    %26 = arith.select %24, %16, %25 : vector<8x128xi1>, vector<8x128xi32>
    %cst_14 = arith.constant dense<2147483647> : vector<8xi32>
    %27 = vector.multi_reduction <minsi>, %26, %cst_14 [1] : vector<8x128xi32> to vector<8xi32>
    %28 = vector.shape_cast %27 : vector<8xi32> to vector<8x1xi32>
    %c0_15 = arith.constant 0 : index
    %c0_16 = arith.constant 0 : index
    %29 = vector.load %arg7[%c0_15, %c0_16] : memref<8x1xi32, #tpu.memory_space<vmem>>, vector<8x1xi32>
    tpu.vector_store %arg7[%c0_15, %c0_16], %28 {strides = array<i32>} : memref<8x1xi32, #tpu.memory_space<vmem>>, vector<8x1xi32>,
    return
  }
  func.func @transform_0(%arg0: i32) -> (i32, i32) {
    %c0_i32 = arith.constant 0 : i32
    %c0_i32_0 = arith.constant 0 : i32
    return %arg0, %c0_i32 : i32, i32
  }
  func.func @transform_1(%arg0: i32) -> (i32, i32) {
    %c0_i32 = arith.constant 0 : i32
    %c0_i32_0 = arith.constant 0 : i32
    %c0_i32_1 = arith.constant 0 : i32
    return %c0_i32, %c0_i32_0 : i32, i32
  }
  func.func @transform_2(%arg0: i32) -> (i32, i32) {
    %c0_i32 = arith.constant 0 : i32
    %c0_i32_0 = arith.constant 0 : i32
    %c0_i32_1 = arith.constant 0 : i32
    return %c0_i32, %c0_i32_0 : i32, i32
  }
  func.func @transform_3(%arg0: i32) -> (i32, i32) {
    %c0_i32 = arith.constant 0 : i32
    %c0_i32_0 = arith.constant 0 : i32
    %c0_i32_1 = arith.constant 0 : i32
    return %c0_i32, %c0_i32_0 : i32, i32
  }
  func.func @transform_4(%arg0: i32) -> (i32, i32) {
    %c0_i32 = arith.constant 0 : i32
    %c0_i32_0 = arith.constant 0 : i32
    %c0_i32_1 = arith.constant 0 : i32
    return %c0_i32, %c0_i32_0 : i32, i32
  }
  func.func @transform_5(%arg0: i32) -> (i32, i32) {
    %c0_i32 = arith.constant 0 : i32
    %c0_i32_0 = arith.constant 0 : i32
    return %arg0, %c0_i32 : i32, i32
  }
  func.func @transform_6(%arg0: i32) -> (i32, i32) {
    %c0_i32 = arith.constant 0 : i32
    %c0_i32_0 = arith.constant 0 : i32
    return %arg0, %c0_i32 : i32, i32
  }
}

</mosaic_0001>

<llo_original>
// kernel: network_forward.1
$region0: #{network_forward.1}
  #allocation0 [shape = 'u32[]', space=smem, size = 0x4, offset = 0x4, fixed_abs, tag = 'smem constant byte address 0x4 - core index']
  #allocation1 [shape = 'u32[144,128]{1,0:T(1,128)}', space=vmem, size = 0x12000, scoped, tag = 'internal scratch']
  %s0 = inlined_call_operand.hbm [shape: f32[8,8], index: 0, kind: input, shape index: {}]
  %s1 = inlined_call_operand.hbm [shape: bf16[8,128], index: 1, kind: input, shape index: {}]
  %s2 = inlined_call_operand.vmem [shape: f32[1,128], index: 2, kind: input, shape index: {}]
  %s3 = inlined_call_operand.hbm [shape: bf16[128,128], index: 3, kind: input, shape index: {}]
  %s4 = inlined_call_operand.vmem [shape: f32[1,128], index: 4, kind: input, shape index: {}]
  %s5 = inlined_call_operand.vmem [shape: f32[8,4], index: 5, kind: output, shape index: {0}]
  %s6 = inlined_call_operand.vmem [shape: s32[8,1], index: 6, kind: output, shape index: {1}]
  %7 = xla_tuple %s5, %s6
  %s8 = sld [smem:[#allocation0]]
  $region50: #{network_forward.1} parent=0
    _
  %s10 = ssub.s32 1, %s8
  %s11 = scalar_select 0, %s10, %s8
  $region1: #{network_forward.1} parent=0
    #allocation2 [shape = 'u8[4096]{0}', space=vmem, size = 0x1000, scoped, tag = 'input window, operand 0, single buffered']
    #allocation3 [shape = 's32[1]{0}', space=sflag, size = 0x4, scoped, tag = 'scoped memory for network_forward.1']
    #allocation4 [shape = 'u8[2048]{0}', space=vmem, size = 0x800, scoped, tag = 'input window, operand 1, single buffered']
    #allocation5 [shape = 's32[1]{0}', space=sflag, size = 0x4, scoped, tag = 'scoped memory for network_forward.1']
    #allocation6 [shape = 'u8[32768]{0}', space=vmem, size = 0x8000, scoped, tag = 'input window, operand 3, single buffered']
    %12 = vsyncpa [#allocation3], 0
    %13 = vsyncpa [#allocation5], 0
    // Predicated region
    $region2: #{network_forward.1} parent=1 // pred_check
      _
    $region3: #{network_forward.1} parent=1 // pred_check_branch
      %15 = sbr.rel (0) target = $region5
    $region4: #{network_forward.1} parent=1 // pred_region
      %s17 = ssub.s32 128, 128
      %18 = vsyncadd [#allocation3], %s17
      %s20 = sshll.u32 [#allocation2], 4
      %s21 = int_to_ptr.vmem [resolvable:$true] %s20
      %23 = dma.hbm_to_vmem [thread:$0]  %s0, 128, %s21, [#allocation3]
    $region5: #{network_forward.1} parent=1 // pred_fallthru
      _
    // Predicated region
    $region6: #{network_forward.1} parent=1 // pred_check
      _
    $region7: #{network_forward.1} parent=1 // pred_check_branch
      %25 = sbr.rel (0) target = $region9
    $region8: #{network_forward.1} parent=1 // pred_region
      %s27 = ssub.s32 64, 64
      %28 = vsyncadd [#allocation5], %s27
      %s30 = sshll.u32 [#allocation4], 4
      %s31 = int_to_ptr.vmem [resolvable:$true] %s30
      %33 = dma.hbm_to_vmem [thread:$0]  %s1, 64, %s31, [#allocation5]
    $region9: #{network_forward.1} parent=1 // pred_fallthru
      _
    // Predicated region
    $region10: #{network_forward.1} parent=1 // pred_check
      _
    $region11: #{network_forward.1} parent=1 // pred_check_branch
      %35 = sbr.rel (0) target = $region13
    $region12: #{network_forward.1} parent=1 // pred_region
      _
    $region13: #{network_forward.1} parent=1 // pred_fallthru
      _
    // Predicated region
    $region14: #{network_forward.1} parent=1 // pred_check
      _
    $region15: #{network_forward.1} parent=1 // pred_check_branch
      %37 = sbr.rel (0) target = $region17
    $region16: #{network_forward.1} parent=1 // pred_region
      %s39 = ssub.s32 1024, 1024
      %40 = vsyncadd [#allocation5], %s39
      %s41 = sshll.u32 [#allocation6], 4
      %s42 = int_to_ptr.vmem [resolvable:$true] %s41
      %47 = dma.hbm_to_vmem [thread:$0]  %s3, 1024, %s42, [#allocation5], 64, 64, 4
    $region17: #{network_forward.1} parent=1 // pred_fallthru
      _
    // Predicated region
    $region18: #{network_forward.1} parent=1 // pred_check
      _
    $region19: #{network_forward.1} parent=1 // pred_check_branch
      %49 = sbr.rel (0) target = $region21
    $region20: #{network_forward.1} parent=1 // pred_region
      _
    $region21: #{network_forward.1} parent=1 // pred_fallthru
      _
    // Predicated region
    $region22: #{network_forward.1} parent=1 // pred_check
      _
    $region23: #{network_forward.1} parent=1 // pred_check_branch
      %51 = sbr.rel (0) target = $region25
    $region24: #{network_forward.1} parent=1 // pred_region
      %52 = dma.done [#allocation3], 128
    $region25: #{network_forward.1} parent=1 // pred_fallthru
      _
    // Predicated region
    $region26: #{network_forward.1} parent=1 // pred_check
      _
    $region27: #{network_forward.1} parent=1 // pred_check_branch
      %54 = sbr.rel (0) target = $region29
    $region28: #{network_forward.1} parent=1 // pred_region
      %55 = dma.done [#allocation5], 64
    $region29: #{network_forward.1} parent=1 // pred_fallthru
      _
    // Predicated region
    $region30: #{network_forward.1} parent=1 // pred_check
      _
    $region31: #{network_forward.1} parent=1 // pred_check_branch
      %57 = sbr.rel (0) target = $region33
    $region32: #{network_forward.1} parent=1 // pred_region
      %58 = dma.done [#allocation5], 1024
    $region33: #{network_forward.1} parent=1 // pred_fallthru
      _
    %v60 = vld [vmem:[#allocation2] sm:$0xff]
    %v61 = vpack.c.bf16 %v60, %v60
    %v62 = vld [vmem:[#allocation4] sm:$0xf]
    %v63 = vld [vmem:[%s2] sm:$0x1]
    %v65 = vlaneseq
    %v66 = vshrl.u32 %v65, 7
    %v67 = vsub.s32 0, %v66
    %v68 = vrot.slane %v63, %v67
    %vm70 = vcmask 64512
    %v72 = vsel %vm70, %v61, 0
    %vm74 = vcmask 1043456
    %v76 = vsel %vm74, %v62, 0
    %78 = vmatprep.subr.bf16.mxu0 0
    %79 = vmatpush1.bf16.msra.mxu0 0
    %80 = vmatprep.subr.bf16.mxu0 0
    %81 = vmatpush1.bf16.msra.mxu0 0
    %82 = vmatprep.subr.bf16.mxu0 0
    %83 = vmatpush1.bf16.msra.mxu0 0
    %84 = vmatprep.subr.bf16.mxu0 0
    %85 = vmatpush1.bf16.msra.mxu0 0
    %86 = vmatprep.subr.bf16.mxu0 0
    %87 = vmatpush1.bf16.msra.mxu0 0
    %88 = vmatprep.subr.bf16.mxu0 0
    %89 = vmatpush1.bf16.msra.mxu0 0
    %90 = vmatprep.subr.bf16.mxu0 0
    %91 = vmatpush1.bf16.msra.mxu0 0
    %92 = vmatprep.subr.bf16.mxu0 0
    %93 = vmatpush1.bf16.msra.mxu0 %v76
    %94 = vmatprep.subr.bf16.mxu0 0
    %95 = vmatpush2.bf16.msra.mxu0 0
    %96 = vmatprep.subr.bf16.mxu0 0
    %97 = vmatpush2.bf16.msra.mxu0 0
    %98 = vmatprep.subr.bf16.mxu0 0
    %99 = vmatpush2.bf16.msra.mxu0 0
    %100 = vmatprep.subr.bf16.mxu0 0
    %101 = vmatpush2.bf16.msra.mxu0 0
    %102 = vmatprep.subr.bf16.mxu0 0
    %103 = vmatpush2.bf16.msra.mxu0 0
    %104 = vmatprep.subr.bf16.mxu0 0
    %105 = vmatpush2.bf16.msra.mxu0 0
    %106 = vmatprep.subr.bf16.mxu0 0
    %107 = vmatpush2.bf16.msra.mxu0 0
    %108 = vmatprep.subr.bf16.mxu0 0
    %109 = vmatpush2.bf16.msra.mxu0 0
    %110 = vmatprep.mubr.bf16.mxu0 0
    %111 = vmatmul.mubr.bf16.gmra.mxu0 %v72
    %v112 = vpop.f32.mrf.mxu0
    %v113 = vadd.f32 %v68, %v112
    %v114 = vpop.f32.mrf.mxu0
    %v115 = vpop.f32.mrf.mxu0
    %v116 = vpop.f32.mrf.mxu0
    %117 = vdwg.mxu0
    %v118 = vtanh.pop %v113
    %v119 = vpack.c.bf16 %v118, %v118
    %v120 = vld [vmem:[#allocation6] sm:$0xf]
    %v121 = vld [vmem:[#allocation6 + $0x4] sm:$0xf]
    %v122 = vld [vmem:[#allocation6 + $0x8] sm:$0xf]
    %v123 = vld [vmem:[#allocation6 + $0xc] sm:$0xf]
    %v124 = vld [vmem:[#allocation6 + $0x10] sm:$0xf]
    %v125 = vld [vmem:[#allocation6 + $0x14] sm:$0xf]
    %v126 = vld [vmem:[#allocation6 + $0x18] sm:$0xf]
    %v127 = vld [vmem:[#allocation6 + $0x1c] sm:$0xf]
    %v128 = vld [vmem:[#allocation6 + $0x20] sm:$0xf]
    %v129 = vld [vmem:[#allocation6 + $0x24] sm:$0xf]
    %v130 = vld [vmem:[#allocation6 + $0x28] sm:$0xf]
    %v131 = vld [vmem:[#allocation6 + $0x2c] sm:$0xf]
    %v132 = vld [vmem:[#allocation6 + $0x30] sm:$0xf]
    %v133 = vld [vmem:[#allocation6 + $0x34] sm:$0xf]
    %v134 = vld [vmem:[#allocation6 + $0x38] sm:$0xf]
    %v135 = vld [vmem:[#allocation6 + $0x3c] sm:$0xf]
    %v136 = vld [vmem:[%s4] sm:$0x1]
    %v138 = vlaneseq
    %v139 = vshrl.u32 %v138, 7
    %v140 = vsub.s32 0, %v139
    %v141 = vrot.slane %v136, %v140
    %v159 = vunpack.c.l.b16 %v120
    %v160 = vunpack.c.l.b16 %v121
    %v161 = vunpack.c.l.b16 %v122
    %v162 = vunpack.c.l.b16 %v123
    %v163 = vunpack.c.l.b16 %v124
    %v164 = vunpack.c.l.b16 %v125
    %v165 = vunpack.c.l.b16 %v126
    %v166 = vunpack.c.l.b16 %v127
    %v167 = vunpack.c.l.b16 %v128
    %v168 = vunpack.c.l.b16 %v129
    %v169 = vunpack.c.l.b16 %v130
    %v170 = vunpack.c.l.b16 %v131
    %v171 = vunpack.c.l.b16 %v132
    %v172 = vunpack.c.l.b16 %v133
    %v173 = vunpack.c.l.b16 %v134
    %v174 = vunpack.c.l.b16 %v135
    %v175 = vpack.c.b16 %v160, %v159
    %v176 = vpack.c.b16 %v162, %v161
    %v177 = vpack.c.b16 %v164, %v163
    %v178 = vpack.c.b16 %v166, %v165
    %v179 = vpack.c.b16 %v168, %v167
    %v180 = vpack.c.b16 %v170, %v169
    %v181 = vpack.c.b16 %v172, %v171
    %v182 = vpack.c.b16 %v174, %v173
    %191 = vmatprep.subr.bf16.mxu0 0
    %192 = vmatpush1.bf16.msra.mxu0 %v182
    %193 = vmatprep.subr.bf16.mxu0 0
    %194 = vmatpush1.bf16.msra.mxu0 %v181
    %195 = vmatprep.subr.bf16.mxu0 0
    %196 = vmatpush1.bf16.msra.mxu0 %v180
    %197 = vmatprep.subr.bf16.mxu0 0
    %198 = vmatpush1.bf16.msra.mxu0 %v179
    %199 = vmatprep.subr.bf16.mxu0 0
    %200 = vmatpush1.bf16.msra.mxu0 %v178
    %201 = vmatprep.subr.bf16.mxu0 0
    %202 = vmatpush1.bf16.msra.mxu0 %v177
    %203 = vmatprep.subr.bf16.mxu0 0
    %204 = vmatpush1.bf16.msra.mxu0 %v176
    %205 = vmatprep.subr.bf16.mxu0 0
    %206 = vmatpush1.bf16.msra.mxu0 %v175
    %207 = vmatprep.subr.bf16.mxu0 0
    %208 = vmatpush2.bf16.msra.mxu0 0
    %209 = vmatprep.subr.bf16.mxu0 0
    %210 = vmatpush2.bf16.msra.mxu0 0
    %211 = vmatprep.subr.bf16.mxu0 0
    %212 = vmatpush2.bf16.msra.mxu0 0
    %213 = vmatprep.subr.bf16.mxu0 0
    %214 = vmatpush2.bf16.msra.mxu0 0
    %215 = vmatprep.subr.bf16.mxu0 0
    %216 = vmatpush2.bf16.msra.mxu0 0
    %217 = vmatprep.subr.bf16.mxu0 0
    %218 = vmatpush2.bf16.msra.mxu0 0
    %219 = vmatprep.subr.bf16.mxu0 0
    %220 = vmatpush2.bf16.msra.mxu0 0
    %221 = vmatprep.subr.bf16.mxu0 0
    %222 = vmatpush2.bf16.msra.mxu0 0
    %223 = vmatprep.mubr.bf16.mxu0 0
    %224 = vmatmul.mubr.bf16.gmra.mxu0 %v119
    %v225 = vpop.f32.mrf.mxu0
    %v226 = vadd.f32 %v141, %v225
    %v227 = vpop.f32.mrf.mxu0
    %v228 = vpop.f32.mrf.mxu0
    %v229 = vpop.f32.mrf.mxu0
    %230 = vdwg.mxu0
    %vm231 = vcmask 31744
    %232 = vst.msk [vmem:[%s5] sm:$0xff] %vm231, %v226
    %v233 = vlaneseq
    %v234 = vand.u32 %v233, 127
    %vm235 = vcmp.lt.s32.totalorder %v234, 4
    %v236 = vsel %vm235, %v226, -inf
    %237 = vmax.xlane.f32.xlu0 %v236
    %v238 = vpop.xlane.xlu0 %237
    %vm239 = vcmp.eq.f32.partialorder %v236, %v238
    %v240 = vsel %vm239, %v234, 128
    %v241 = vand.u32 %v240, 65535
    %v242 = vshra.s32 %v240, 16
    %v243 = vcvt.s32.f32 %v241
    %v244 = vcvt.s32.f32 %v242
    %245 = vmin.xlane.f32.xlu0 %v244
    %v246 = vpop.xlane.xlu0 %245
    %vm247 = vcmp.eq.f32.partialorder %v244, %v246
    %v248 = vsel %vm247, %v243, inf
    %249 = vmin.xlane.f32.xlu0 %v248
    %v250 = vpop.xlane.xlu0 %249
    %v251 = vcvt.f32.s32 %v250
    %v252 = vcvt.f32.s32 %v246
    %v253 = vshll.u32 %v252, 16
    %v254 = vadd.s32 %v253, %v251
    %vm255 = vcmask 7168
    %256 = vst.msk [vmem:[%s6] sm:$0xff] %vm255, %v254
    // Predicated region
    $region34: #{network_forward.1} parent=1 // pred_check
      _
    $region35: #{network_forward.1} parent=1 // pred_check_branch
      %258 = sbr.rel (0) target = $region37
    $region36: #{network_forward.1} parent=1 // pred_region
      _
    $region37: #{network_forward.1} parent=1 // pred_fallthru
      _
    // Predicated region
    $region38: #{network_forward.1} parent=1 // pred_check
      _
    $region39: #{network_forward.1} parent=1 // pred_check_branch
      %260 = sbr.rel (0) target = $region41
    $region40: #{network_forward.1} parent=1 // pred_region
      _
    $region41: #{network_forward.1} parent=1 // pred_fallthru
      _
    // Predicated region
    $region42: #{network_forward.1} parent=1 // pred_check
      _
    $region43: #{network_forward.1} parent=1 // pred_check_branch
      %262 = sbr.rel (0) target = $region45
    $region44: #{network_forward.1} parent=1 // pred_region
      _
    $region45: #{network_forward.1} parent=1 // pred_fallthru
      _
    // Predicated region
    $region46: #{network_forward.1} parent=1 // pred_check
      _
    $region47: #{network_forward.1} parent=1 // pred_check_branch
      %264 = sbr.rel (0) target = $region49
    $region48: #{network_forward.1} parent=1 // pred_region
      _
    $region49: #{network_forward.1} parent=1 // pred_fallthru
      _
    %265 = vsyncpa [#allocation3], 1
    %266 = vsyncpa [#allocation5], 1

</llo_original>
